<compile_context>
chip_gen: v5e
topology: v5e:2x2
jax: 0.10.0
libtpu: 0.0.40
codegen_flags: <defaults>
</compile_context>

<pallas_src>
import jax
import jax.numpy as jnp
from jax.experimental import pallas as pl
from jax.experimental.pallas import tpu as pltpu


def _se_kernel(x_ref, w1t_ref, b1_ref, w2t_ref, b2_ref, o_ref):
    """Block shapes: x/o (bt, C, HW); w1t (Ch, C); b1 (Ch, 1); w2t (C, Ch); b2 (C, 1)."""
    bt, c, hw = x_ref.shape
    inv_hw = jnp.float32(1.0 / hw)
    # HIGHEST keeps the f32 dot-with-ones bit-accurate (multi-pass); for bf16
    # transport the default single-pass bf16->f32 accumulation is already exact.
    prec = jax.lax.Precision.HIGHEST if x_ref.dtype == jnp.float32 else None

    # ---- Squeeze: pool every image in the block.  Sum goes through the MXU
    #      (dot against a ones column, f32 accumulate); max is exact in the
    #      native dtype.  Statically unrolled so image b+1's loads/reductions
    #      overlap image b's MXU/EUP tail.
    ones_col = jnp.ones((hw, 1), dtype=x_ref.dtype)
    cols = []
    for b in range(bt):
        xb = x_ref[b]                                              # (C, HW), native dtype
        psum = jnp.dot(xb, ones_col,
                       preferred_element_type=jnp.float32,
                       precision=prec)                             # (C, 1) f32
        pmax = jnp.max(xb, axis=-1, keepdims=True).astype(jnp.float32)
        cols.append(psum * inv_hw + pmax)                          # avg + max
    pooled = cols[0] if bt == 1 else jnp.concatenate(cols, axis=1)  # (C, bt) f32

    # ---- Excitation MLP, batched over the block in column form so the
    #      per-channel scales land with C on sublanes (lane-broadcastable
    #      against the (C, HW) images with no relayout).
    h = jnp.dot(w1t_ref[...], pooled,
                preferred_element_type=jnp.float32) + b1_ref[...]   # (Ch, bt)
    h = jnp.maximum(h, 0.0)
    s = jnp.dot(w2t_ref[...], h,
                preferred_element_type=jnp.float32) + b2_ref[...]   # (C, bt)
    s = jax.nn.sigmoid(s) + 1.0          # x * s + x == x * (s + 1)

    # ---- Scale + residual.  x is already resident in VMEM; the re-read is
    #      cheap vld traffic.  Statically unrolled.
    for b in range(bt):
        sb = s[:, b:b + 1]                                          # (C, 1) f32
        o_ref[b] = (x_ref[b].astype(jnp.float32) * sb).astype(o_ref.dtype)


def _vmem_budget_bytes():
    try:
        cap = int(getattr(pltpu.get_tpu_info(), "vmem_capacity_bytes", 64 << 20))
    except Exception:
        cap = 64 << 20                     # conservative fallback (v7x physical)
    # ~75% of physical, capped at 96 MiB: the HBM roofline saturates well
    # before that block size, and the headroom covers compiler scratch plus
    # double-buffered weights (v7x: 48 MiB of its 64 MiB physical).
    return min((cap * 3) // 4, 96 << 20)


def _pick_batch_tile(B, C, HW, itemsize, vmem_limit_bytes, *,
                     target_x_block_bytes=4 << 20, max_bt=32, min_grid=8):
    """Images per grid step.  Targets a ~4 MiB x block, keeps >= min_grid grid
    steps when B allows (>= 2 steps per v7x TensorCore), and budgets VMEM for
    the double-buffered in/out transport *plus* the in-kernel f32 temporaries."""
    per_image_transport = C * HW * itemsize
    per_image_vmem = 4 * per_image_transport + 2 * C * HW * 4   # 2x in + 2x out + f32 temps
    bt_vmem = max(1, (vmem_limit_bytes - (1 << 20)) // per_image_vmem)
    bt_target = max(1, target_x_block_bytes // per_image_transport)
    bt_pipe = max(1, B // min_grid)
    return max(1, min(B, bt_target, bt_vmem, bt_pipe, max_bt))


@jax.jit
def se_layer(x_nchw, w1, b1, w2, b2):
    """SE forward. x_nchw: (B, C, H, W). w1: (C, Ch), b1: (Ch,), w2: (Ch, C), b2: (C,)."""
    B, C, H, W = x_nchw.shape
    HW = H * W
    Ch = w1.shape[1]

    # Free view: contiguous NCHW -> (B, C, HW).  No transpose, no HBM copy.
    # TODO(synk): if H*W is far from a 128-multiple (7x7 / 14x14 SE blocks) the
    # lane axis pads and stores become masked; fold channels into the lane axis
    # for those shapes to stay lane-dense.
    x = x_nchw.reshape(B, C, HW)
    # Tiny one-time weight relayout for the column-form MLP.
    w1t = jnp.transpose(w1)                # (Ch, C)
    w2t = jnp.transpose(w2)                # (C, Ch)
    b1c = jnp.reshape(b1, (Ch, 1))
    b2c = jnp.reshape(b2, (C, 1))

    vmem_limit = _vmem_budget_bytes()
    bt = _pick_batch_tile(B, C, HW, x.dtype.itemsize, vmem_limit)
    grid = pl.cdiv(B, bt)                  # partial last block is masked by Pallas
    # TODO(synk): if a single (C, HW) image ever exceeds the VMEM budget, add a
    # second "arbitrary" grid axis tiling HW (accumulate sum/max in a (C, 1)
    # scratch, apply the scale in a second pass).

    out = pl.pallas_call(
        _se_kernel,
        out_shape=jax.ShapeDtypeStruct((B, C, HW), x.dtype),
        grid_spec=pltpu.PrefetchScalarGridSpec(
            num_scalar_prefetch=0,
            grid=(grid,),
            in_specs=[
                pl.BlockSpec((bt, C, HW), lambda i: (i, 0, 0)),
                pl.BlockSpec((Ch, C), lambda i: (0, 0)),
                pl.BlockSpec((Ch, 1), lambda i: (0, 0)),
                pl.BlockSpec((C, Ch), lambda i: (0, 0)),
                pl.BlockSpec((C, 1), lambda i: (0, 0)),
            ],
            out_specs=pl.BlockSpec((bt, C, HW), lambda i: (i, 0, 0)),
        ),
        compiler_params=pltpu.CompilerParams(
            dimension_semantics=("parallel",),
            vmem_limit_bytes=vmem_limit,
        ),
    )(x, w1t, b1c, w2t, b2c)

    return out.reshape(B, C, H, W)


def se_layer_ref(x, w1, b1, w2, b2):
    """Plain-JAX reference mirroring the PyTorch forward."""
    avg = jnp.mean(x, axis=(2, 3))            # (B, C)
    mx = jnp.max(x, axis=(2, 3))              # (B, C)
    pooled = avg + mx
    h = jnp.maximum(pooled @ w1 + b1, 0.0)
    s = jax.nn.sigmoid(h @ w2 + b2)           # (B, C)
    return x * s[:, :, None, None] + x


if __name__ == "__main__":
    C, H, W = 64, 16, 16
    reduction = 16
    Ch = C // reduction                        # hidden dim of the SE MLP

    key = jax.random.PRNGKey(0)
    kx, kx2, k1, k2, k3, k4 = jax.random.split(key, 6)

    # Deterministic parameter init, stored as y = x @ W + b.
    bound1 = 1.0 / (C ** 0.5)
    w1 = jax.random.uniform(k1, (C, Ch), jnp.float32, -bound1, bound1)
    b1 = jax.random.uniform(k2, (Ch,), jnp.float32, -bound1, bound1)
    bound2 = 1.0 / (Ch ** 0.5)
    w2 = jax.random.uniform(k3, (Ch, C), jnp.float32, -bound2, bound2)
    b2 = jax.random.uniform(k4, (C,), jnp.float32, -bound2, bound2)

    # 1) Small f32 case (bt = 1, grid = 2).
    x = jax.random.normal(kx, (2, C, H, W), dtype=jnp.float32)
    out = jax.block_until_ready(se_layer(x, w1, b1, w2, b2))
    ref = se_layer_ref(x, w1, b1, w2, b2)
    assert out.shape == x.shape
    assert jnp.allclose(out, ref, atol=1e-4, rtol=1e-5), "f32 mismatch vs reference"

    # 2) Larger f32 case exercising bt > 1 and a partial last block (B=17 -> bt=2, grid=9).
    x2 = jax.random.normal(kx2, (17, C, H, W), dtype=jnp.float32)
    out2 = jax.block_until_ready(se_layer(x2, w1, b1, w2, b2))
    ref2 = se_layer_ref(x2, w1, b1, w2, b2)
    assert jnp.allclose(out2, ref2, atol=1e-4, rtol=1e-5), "f32 (B=17) mismatch vs reference"

    # 3) bf16 transport (the big HBM-bandwidth lever); math stays f32 inside.
    xb = x.astype(jnp.bfloat16)
    outb = jax.block_until_ready(se_layer(xb, w1, b1, w2, b2))
    refb = se_layer_ref(xb.astype(jnp.float32), w1, b1, w2, b2)
    assert jnp.allclose(outb.astype(jnp.float32), refb, atol=5e-2, rtol=5e-2), \
        "bf16 mismatch vs reference"

    print("KERNEL_OK")
</pallas_src>

<mosaic_0001>
module attributes {stable_mosaic.version = 11 : i64} {
  func.func @_se_kernel(%arg0: i32, %arg1: memref<1x64x256xf32, #tpu.memory_space<vmem>>, %arg2: memref<4x64xf32, #tpu.memory_space<vmem>>, %arg3: memref<4x1xf32, #tpu.memory_space<vmem>>, %arg4: memref<64x4xf32, #tpu.memory_space<vmem>>, %arg5: memref<64x1xf32, #tpu.memory_space<vmem>>, %arg6: memref<1x64x256xf32, #tpu.memory_space<vmem>>) attributes {dimension_semantics = [#tpu.dimension_semantics<parallel>], iteration_bounds = array<i64: 2>, scalar_prefetch = 0 : i64, scratch_operands = 0 : i64, tpu.core_type = #tpu.core_type<tc>, window_params = [{transform_indices = @transform_0, window_bounds = array<i64: 1, 64, 256>}, {pipeline_mode = #tpu.pipeline_mode<synchronous>, transform_indices = @transform_1, window_bounds = array<i64: 4, 64>}, {pipeline_mode = #tpu.pipeline_mode<synchronous>, transform_indices = @transform_2, window_bounds = array<i64: 4, 1>}, {pipeline_mode = #tpu.pipeline_mode<synchronous>, transform_indices = @transform_3, window_bounds = array<i64: 64, 4>}, {pipeline_mode = #tpu.pipeline_mode<synchronous>, transform_indices = @transform_4, window_bounds = array<i64: 64, 1>}, {transform_indices = @transform_5, window_bounds = array<i64: 1, 64, 256>}]} {
    %cst = arith.constant 1.000000e+00 : f32
    %0 = vector.broadcast %cst : f32 to vector<256x1xf32>
    %c0 = arith.constant 0 : index
    %c0_0 = arith.constant 0 : index
    %c0_1 = arith.constant 0 : index
    %1 = vector.load %arg1[%c0, %c0_0, %c0_1] : memref<1x64x256xf32, #tpu.memory_space<vmem>>, vector<1x64x256xf32>
    %2 = vector.shape_cast %1 : vector<1x64x256xf32> to vector<64x256xf32>
    %cst_2 = arith.constant dense<0.000000e+00> : vector<64x1xf32>
    %3 = tpu.matmul %2, %0, %cst_2 {dimension_numbers = #tpu.dot_dimension_numbers<[1], [0], [0], [1], [0, 0, 1, 1], [], []>, precision = #tpu.contract_precision<fp32>} : vector<64x256xf32>, vector<256x1xf32>, vector<64x1xf32> -> vector<64x1xf32>
    %cst_3 = arith.constant dense<0xFF800000> : vector<64xf32>
    %4 = vector.multi_reduction <maximumf>, %2, %cst_3 [1] : vector<64x256xf32> to vector<64xf32>
    %5 = vector.shape_cast %4 : vector<64xf32> to vector<64x1xf32>
    %cst_4 = arith.constant 3.906250e-03 : f32
    %6 = vector.broadcast %cst_4 : f32 to vector<64x1xf32>
    %7 = arith.mulf %3, %6 : vector<64x1xf32>
    %8 = arith.addf %7, %5 : vector<64x1xf32>
    %c0_5 = arith.constant 0 : index
    %c0_6 = arith.constant 0 : index
    %9 = vector.load %arg2[%c0_5, %c0_6] : memref<4x64xf32, #tpu.memory_space<vmem>>, vector<4x64xf32>
    %cst_7 = arith.constant dense<0.000000e+00> : vector<4x1xf32>
    %10 = tpu.matmul %9, %8, %cst_7 {dimension_numbers = #tpu.dot_dimension_numbers<[1], [0], [0], [1], [0, 0, 1, 1], [], []>} : vector<4x64xf32>, vector<64x1xf32>, vector<4x1xf32> -> vector<4x1xf32>
    %c0_8 = arith.constant 0 : index
    %c0_9 = arith.constant 0 : index
    %11 = vector.load %arg3[%c0_8, %c0_9] : memref<4x1xf32, #tpu.memory_space<vmem>>, vector<4x1xf32>
    %12 = arith.addf %10, %11 : vector<4x1xf32>
    %cst_10 = arith.constant 0.000000e+00 : f32
    %13 = vector.broadcast %cst_10 : f32 to vector<4x1xf32>
    %14 = arith.maximumf %12, %13 : vector<4x1xf32>
    %c0_11 = arith.constant 0 : index
    %c0_12 = arith.constant 0 : index
    %15 = vector.load %arg4[%c0_11, %c0_12] : memref<64x4xf32, #tpu.memory_space<vmem>>, vector<64x4xf32>
    %cst_13 = arith.constant dense<0.000000e+00> : vector<64x1xf32>
    %16 = tpu.matmul %15, %14, %cst_13 {dimension_numbers = #tpu.dot_dimension_numbers<[1], [0], [0], [1], [0, 0, 1, 1], [], []>} : vector<64x4xf32>, vector<4x1xf32>, vector<64x1xf32> -> vector<64x1xf32>
    %c0_14 = arith.constant 0 : index
    %c0_15 = arith.constant 0 : index
    %17 = vector.load %arg5[%c0_14, %c0_15] : memref<64x1xf32, #tpu.memory_space<vmem>>, vector<64x1xf32>
    %18 = arith.addf %16, %17 : vector<64x1xf32>
    %19 = arith.negf %18 : vector<64x1xf32>
    %20 = math.exp %19 : vector<64x1xf32>
    %cst_16 = arith.constant 1.000000e+00 : f32
    %21 = vector.broadcast %cst_16 : f32 to vector<64x1xf32>
    %22 = arith.addf %21, %20 : vector<64x1xf32>
    %23 = arith.divf %21, %22 : vector<64x1xf32>
    %cst_17 = arith.constant 1.000000e+00 : f32
    %24 = vector.broadcast %cst_17 : f32 to vector<64x1xf32>
    %25 = arith.addf %23, %24 : vector<64x1xf32>
    %c0_18 = arith.constant 0 : index
    %c0_19 = arith.constant 0 : index
    %c0_20 = arith.constant 0 : index
    %26 = vector.load %arg1[%c0_18, %c0_19, %c0_20] : memref<1x64x256xf32, #tpu.memory_space<vmem>>, vector<1x64x256xf32>
    %27 = vector.shape_cast %26 : vector<1x64x256xf32> to vector<64x256xf32>
    %28 = vector.broadcast %25 : vector<64x1xf32> to vector<64x256xf32>
    %29 = arith.mulf %27, %28 : vector<64x256xf32>
    %c0_21 = arith.constant 0 : index
    %c0_22 = arith.constant 0 : index
    %c0_23 = arith.constant 0 : index
    %30 = vector.load %arg6[%c0_21, %c0_22, %c0_23] : memref<1x64x256xf32, #tpu.memory_space<vmem>>, vector<1x64x256xf32>
    %31 = vector.shape_cast %30 : vector<1x64x256xf32> to vector<64x256xf32>
    %32 = vector.shape_cast %29 : vector<64x256xf32> to vector<1x64x256xf32>
    tpu.vector_store %arg6[%c0_21, %c0_22, %c0_23], %32 {strides = array<i32>} : memref<1x64x256xf32, #tpu.memory_space<vmem>>, vector<1x64x256xf32>,
    return
  }
  func.func @transform_0(%arg0: i32) -> (i32, i32, i32) {
    %c0_i32 = arith.constant 0 : i32
    %c0_i32_0 = arith.constant 0 : i32
    %c0_i32_1 = arith.constant 0 : i32
    return %arg0, %c0_i32, %c0_i32_0 : i32, i32, i32
  }
  func.func @transform_1(%arg0: i32) -> (i32, i32) {
    %c0_i32 = arith.constant 0 : i32
    %c0_i32_0 = arith.constant 0 : i32
    %c0_i32_1 = arith.constant 0 : i32
    return %c0_i32, %c0_i32_0 : i32, i32
  }
  func.func @transform_2(%arg0: i32) -> (i32, i32) {
    %c0_i32 = arith.constant 0 : i32
    %c0_i32_0 = arith.constant 0 : i32
    %c0_i32_1 = arith.constant 0 : i32
    return %c0_i32, %c0_i32_0 : i32, i32
  }
  func.func @transform_3(%arg0: i32) -> (i32, i32) {
    %c0_i32 = arith.constant 0 : i32
    %c0_i32_0 = arith.constant 0 : i32
    %c0_i32_1 = arith.constant 0 : i32
    return %c0_i32, %c0_i32_0 : i32, i32
  }
  func.func @transform_4(%arg0: i32) -> (i32, i32) {
    %c0_i32 = arith.constant 0 : i32
    %c0_i32_0 = arith.constant 0 : i32
    %c0_i32_1 = arith.constant 0 : i32
    return %c0_i32, %c0_i32_0 : i32, i32
  }
  func.func @transform_5(%arg0: i32) -> (i32, i32, i32) {
    %c0_i32 = arith.constant 0 : i32
    %c0_i32_0 = arith.constant 0 : i32
    %c0_i32_1 = arith.constant 0 : i32
    return %arg0, %c0_i32, %c0_i32_0 : i32, i32, i32
  }
}

</mosaic_0001>

<llo_original>
// kernel: se_layer.1
$region0: #{se_layer.1}
  #allocation0 [shape = 'u32[]', space=smem, size = 0x4, offset = 0x4, fixed_abs, tag = 'smem constant byte address 0x4 - core index']
  #allocation1 [shape = 'u32[72,128]{1,0:T(1,128)}', space=vmem, size = 0x9000, scoped, tag = 'internal scratch']
  %s0 = inlined_call_operand.vmem [shape: f32[2,64,256], index: 0, kind: input, shape index: {}]
  %s1 = inlined_call_operand.vmem [shape: f32[4,64], index: 1, kind: input, shape index: {}]
  %s2 = inlined_call_operand.vmem [shape: f32[4,1], index: 2, kind: input, shape index: {}]
  %s3 = inlined_call_operand.vmem [shape: f32[64,4], index: 3, kind: input, shape index: {}]
  %s4 = inlined_call_operand.vmem [shape: f32[64,1], index: 4, kind: input, shape index: {}]
  %s5 = inlined_call_operand.vmem [shape: f32[2,64,256], index: 5, kind: output, shape index: {}]
  %s6 = sld [smem:[#allocation0]]
  $region53: #{se_layer.1} parent=0
    _
  %s8 = ssub.s32 1, %s6
  %s9 = scalar_select 0, %s8, %s6
  loop: start=0, step=1, limit=4
  $region2: #{se_layer.1} parent=0 // loop_pre_header
    _
  $region3: #{se_layer.1} parent=0 // loop_header
    %s11 = sphi 0, %s15
    %p12 = scmp.ge.s32.totalorder %s11, 4
    %s21 = sphi 0, %s23
    %s24 = sphi 0, %s21
    %s25 = sphi 0, %s24
    %s41 = sphi 0, %s25
    %s45 = sphi 0, %s45
    %s47 = sphi 0, %s45
    %s48 = sphi 0, %s47
    %s62 = sphi 0, %s48
    %s66 = sphi 0, %s66
    %s68 = sphi 0, %s66
    %s69 = sphi 0, %s68
    %s83 = sphi 0, %s69
    %s87 = sphi 0, %s87
    %s89 = sphi 0, %s87
    %s90 = sphi 0, %s89
    %s104 = sphi 0, %s90
    %s108 = sphi 0, %s108
    %s110 = sphi 0, %s108
    %s111 = sphi 0, %s110
    %s125 = sphi 0, %s111
    %s131 = sphi 0, %s133
    %s134 = sphi 0, %s131
    %s135 = sphi 0, %s134
    %s151 = sphi 0, %s135
  $region4: #{se_layer.1} parent=0 // loop_header_branch
    %14 = sbr.rel (%p12) target = $region8
  $region5: #{se_layer.1} parent=0 // loop_body
    %s16 = ssub.s32 %s11, 1
    %s17 = ssub.s32 %s11, 2
    %s18 = sadd.s32 %s11, 1
    %s19 = ssub.s32 %s11, %s18
    %p20 = scmp.eq.s32.totalorder %s19, 0
    %s22 = sadd.s32 %s21, 1
    %s23 = scalar_select %p20, %s21, %s22
    %p26 = pneg %p20
    %p27 = scmp.eq.s32.totalorder %s11, 1
    %p28 = por %p26, %p27
    %p29 = scmp.ne.s32.totalorder %s21, %s24
    %p30 = scmp.eq.s32.totalorder %s11, 0
    %p31 = por %p29, %p30
    %p32 = scmp.ne.s32.totalorder %s21, %s24
    %p33 = scmp.eq.s32.totalorder %s16, 1
    %p34 = por %p32, %p33
    %p35 = scmp.ne.s32.totalorder %s24, %s25
    %p36 = scmp.eq.s32.totalorder %s16, 0
    %p37 = por %p35, %p36
    %p38 = scmp.ne.s32.totalorder %s24, %s25
    %p39 = scmp.eq.s32.totalorder %s17, 1
    %p40 = por %p38, %p39
    %p42 = scmp.ne.s32.totalorder %s25, %s41
    %p43 = scmp.eq.s32.totalorder %s17, 0
    %p44 = por %p42, %p43
    %s46 = sadd.s32 %s45, 1
    %p49 = scmp.eq.s32.totalorder %s11, 1
    %p50 = scmp.ne.s32.totalorder %s45, %s47
    %p51 = scmp.eq.s32.totalorder %s11, 0
    %p52 = por %p50, %p51
    %p53 = scmp.ne.s32.totalorder %s45, %s47
    %p54 = scmp.eq.s32.totalorder %s16, 1
    %p55 = por %p53, %p54
    %p56 = scmp.ne.s32.totalorder %s47, %s48
    %p57 = scmp.eq.s32.totalorder %s16, 0
    %p58 = por %p56, %p57
    %p59 = scmp.ne.s32.totalorder %s47, %s48
    %p60 = scmp.eq.s32.totalorder %s17, 1
    %p61 = por %p59, %p60
    %p63 = scmp.ne.s32.totalorder %s48, %s62
    %p64 = scmp.eq.s32.totalorder %s17, 0
    %p65 = por %p63, %p64
    %s67 = sadd.s32 %s66, 1
    %p70 = scmp.eq.s32.totalorder %s11, 1
    %p71 = scmp.ne.s32.totalorder %s66, %s68
    %p72 = scmp.eq.s32.totalorder %s11, 0
    %p73 = por %p71, %p72
    %p74 = scmp.ne.s32.totalorder %s66, %s68
    %p75 = scmp.eq.s32.totalorder %s16, 1
    %p76 = por %p74, %p75
    %p77 = scmp.ne.s32.totalorder %s68, %s69
    %p78 = scmp.eq.s32.totalorder %s16, 0
    %p79 = por %p77, %p78
    %p80 = scmp.ne.s32.totalorder %s68, %s69
    %p81 = scmp.eq.s32.totalorder %s17, 1
    %p82 = por %p80, %p81
    %p84 = scmp.ne.s32.totalorder %s69, %s83
    %p85 = scmp.eq.s32.totalorder %s17, 0
    %p86 = por %p84, %p85
    %s88 = sadd.s32 %s87, 1
    %p91 = scmp.eq.s32.totalorder %s11, 1
    %p92 = scmp.ne.s32.totalorder %s87, %s89
    %p93 = scmp.eq.s32.totalorder %s11, 0
    %p94 = por %p92, %p93
    %p95 = scmp.ne.s32.totalorder %s87, %s89
    %p96 = scmp.eq.s32.totalorder %s16, 1
    %p97 = por %p95, %p96
    %p98 = scmp.ne.s32.totalorder %s89, %s90
    %p99 = scmp.eq.s32.totalorder %s16, 0
    %p100 = por %p98, %p99
    %p101 = scmp.ne.s32.totalorder %s89, %s90
    %p102 = scmp.eq.s32.totalorder %s17, 1
    %p103 = por %p101, %p102
    %p105 = scmp.ne.s32.totalorder %s90, %s104
    %p106 = scmp.eq.s32.totalorder %s17, 0
    %p107 = por %p105, %p106
    %s109 = sadd.s32 %s108, 1
    %p112 = scmp.eq.s32.totalorder %s11, 1
    %p113 = scmp.ne.s32.totalorder %s108, %s110
    %p114 = scmp.eq.s32.totalorder %s11, 0
    %p115 = por %p113, %p114
    %p116 = scmp.ne.s32.totalorder %s108, %s110
    %p117 = scmp.eq.s32.totalorder %s16, 1
    %p118 = por %p116, %p117
    %p119 = scmp.ne.s32.totalorder %s110, %s111
    %p120 = scmp.eq.s32.totalorder %s16, 0
    %p121 = por %p119, %p120
    %p122 = scmp.ne.s32.totalorder %s110, %s111
    %p123 = scmp.eq.s32.totalorder %s17, 1
    %p124 = por %p122, %p123
    %p126 = scmp.ne.s32.totalorder %s111, %s125
    %p127 = scmp.eq.s32.totalorder %s17, 0
    %p128 = por %p126, %p127
    %s129 = ssub.s32 %s11, %s18
    %p130 = scmp.eq.s32.totalorder %s129, 0
    %s132 = sadd.s32 %s131, 1
    %s133 = scalar_select %p130, %s131, %s132
    %p136 = pneg %p130
    %p137 = scmp.eq.s32.totalorder %s11, 1
    %p138 = por %p136, %p137
    %p139 = scmp.ne.s32.totalorder %s131, %s134
    %p140 = scmp.eq.s32.totalorder %s11, 0
    %p141 = por %p139, %p140
    %p142 = scmp.ne.s32.totalorder %s131, %s134
    %p143 = scmp.eq.s32.totalorder %s16, 1
    %p144 = por %p142, %p143
    %p145 = scmp.ne.s32.totalorder %s134, %s135
    %p146 = scmp.eq.s32.totalorder %s16, 0
    %p147 = por %p145, %p146
    %p148 = scmp.ne.s32.totalorder %s134, %s135
    %p149 = scmp.eq.s32.totalorder %s17, 1
    %p150 = por %p148, %p149
    %p152 = scmp.ne.s32.totalorder %s135, %s151
    %p153 = scmp.eq.s32.totalorder %s17, 0
    %p154 = por %p152, %p153
    %p155 = scmp.le.s32.totalorder 1, %s11
    %p156 = scmp.lt.s32.totalorder %s11, 3
    %p157 = pnand %p155, %p156
    %p158 = pneg %p157
    // Predicated region
    $region9: #{se_layer.1} parent=5 // pred_check
      _
    $region10: #{se_layer.1} parent=5 // pred_check_branch
      %160 = sbr.rel (%p157) target = $region12
    $region11: #{se_layer.1} parent=5 // pred_region
      %s161 = ssub.s32 %s11, 1
      // Predicated region
      $region13: #{se_layer.1} parent=11 // pred_check
        %p162 = pneg %p58
      $region14: #{se_layer.1} parent=11 // pred_check_branch
        %164 = sbr.rel (%p162) target = $region16
      $region15: #{se_layer.1} parent=11 // pred_region
        _
      $region16: #{se_layer.1} parent=11 // pred_fallthru
        _
      // Predicated region
      $region17: #{se_layer.1} parent=11 // pred_check
        %p165 = pneg %p79
      $region18: #{se_layer.1} parent=11 // pred_check_branch
        %167 = sbr.rel (%p165) target = $region20
      $region19: #{se_layer.1} parent=11 // pred_region
        _
      $region20: #{se_layer.1} parent=11 // pred_fallthru
        _
      // Predicated region
      $region21: #{se_layer.1} parent=11 // pred_check
        %p168 = pneg %p100
      $region22: #{se_layer.1} parent=11 // pred_check_branch
        %170 = sbr.rel (%p168) target = $region24
      $region23: #{se_layer.1} parent=11 // pred_region
        _
      $region24: #{se_layer.1} parent=11 // pred_fallthru
        _
      // Predicated region
      $region25: #{se_layer.1} parent=11 // pred_check
        %p171 = pneg %p121
      $region26: #{se_layer.1} parent=11 // pred_check_branch
        %173 = sbr.rel (%p171) target = $region28
      $region27: #{se_layer.1} parent=11 // pred_region
        _
      $region28: #{se_layer.1} parent=11 // pred_fallthru
        _
    $region12: #{se_layer.1} parent=5 // pred_fallthru
      _
    %p174 = scmp.lt.s32.totalorder %s11, 2
    // Predicated region
    $region29: #{se_layer.1} parent=5 // pred_check
      %p175 = pneg %p174
    $region30: #{se_layer.1} parent=5 // pred_check_branch
      %177 = sbr.rel (%p175) target = $region32
    $region31: #{se_layer.1} parent=5 // pred_region
      // Predicated region
      $region33: #{se_layer.1} parent=31 // pred_check
        %p178 = pneg %p31
      $region34: #{se_layer.1} parent=31 // pred_check_branch
        %180 = sbr.rel (%p178) target = $region36
      $region35: #{se_layer.1} parent=31 // pred_region
        %p181 = scmp.lt.s32.totalorder %s11, 1
        %s182 = scalar_select %p181, %s11, 1
        %s183 = smul.addr %s182, 16
        %s184 = smul.addr %s183, 8
        %s185 = scalar_lea.vmem %s0, %s184
      $region36: #{se_layer.1} parent=31 // pred_fallthru
        _
    $region32: #{se_layer.1} parent=5 // pred_fallthru
      _
    %p186 = scmp.le.s32.totalorder 1, %s11
    %p187 = scmp.lt.s32.totalorder %s11, 3
    %p188 = pnand %p186, %p187
    %p189 = pneg %p188
    // Predicated region
    $region37: #{se_layer.1} parent=5 // pred_check
      _
    $region38: #{se_layer.1} parent=5 // pred_check_branch
      %191 = sbr.rel (%p188) target = $region40
    $region39: #{se_layer.1} parent=5 // pred_region
      %s192 = ssub.s32 %s11, 1
      %p193 = scmp.lt.s32.totalorder %s16, 1
      %s194 = scalar_select %p193, %s16, 1
      %s195 = smul.addr %s194, 16
      %s196 = smul.addr %s195, 8
      %s197 = scalar_lea.vmem %s0, %s196
      %p198 = pneg %p37
      %p199 = pneg %p34
      %p200 = pneg %p58
      %p201 = pneg %p55
      %p202 = pneg %p79
      %p203 = pneg %p76
      %p204 = pneg %p100
      %p205 = pneg %p97
      %p206 = pneg %p121
      %p207 = pneg %p118
      %p208 = pneg %p147
      %p209 = pneg %p144
      %p210 = scmp.lt.s32.totalorder %s16, 1
      %s211 = scalar_select %p210, %s16, 1
      %s212 = smul.addr %s211, 16
      %s213 = smul.addr %s212, 8
      %s214 = scalar_lea.vmem %s5, %s213
      %p215 = scmp.lt.s32.totalorder %s16, 1
      %s216 = scalar_select %p215, %s16, 1
      %s217 = smul.addr %s216, 16
      %s218 = smul.addr %s217, 8
      %s219 = scalar_lea.vmem %s0, %s218
      %p220 = scmp.lt.s32.totalorder %s16, 1
      %s221 = scalar_select %p220, %s16, 1
      %s222 = smul.addr %s221, 16
      %s223 = smul.addr %s222, 8
      %s224 = scalar_lea.vmem %s5, %s223
      %v225 = vld [vmem:[%s219] sm:$0xff]
      %v226 = vld [vmem:[%s219 + $0x8] sm:$0xff]
      %v227 = vld [vmem:[%s219 + $0x10] sm:$0xff]
      %v228 = vld [vmem:[%s219 + $0x18] sm:$0xff]
      %v229 = vld [vmem:[%s219 + $0x20] sm:$0xff]
      %v230 = vld [vmem:[%s219 + $0x28] sm:$0xff]
      %v231 = vld [vmem:[%s219 + $0x30] sm:$0xff]
      %v232 = vld [vmem:[%s219 + $0x38] sm:$0xff]
      %v233 = vld [vmem:[%s219 + $0x40] sm:$0xff]
      %v234 = vld [vmem:[%s219 + $0x48] sm:$0xff]
      %v235 = vld [vmem:[%s219 + $0x50] sm:$0xff]
      %v236 = vld [vmem:[%s219 + $0x58] sm:$0xff]
      %v237 = vld [vmem:[%s219 + $0x60] sm:$0xff]
      %v238 = vld [vmem:[%s219 + $0x68] sm:$0xff]
      %v239 = vld [vmem:[%s219 + $0x70] sm:$0xff]
      %v240 = vld [vmem:[%s219 + $0x78] sm:$0xff]
      %241 = vmatpush.msra.mxu0 1.0
      %242 = vmatpush.msra.mxu0 1.0
      %243 = vmatpush.msra.mxu0 1.0
      %244 = vmatpush.msra.mxu0 1.0
      %245 = vmatpush.msra.mxu0 1.0
      %246 = vmatpush.msra.mxu0 1.0
      %247 = vmatpush.msra.mxu0 1.0
      %248 = vmatpush.msra.mxu0 1.0
      %249 = vmatpush.msra.mxu0 1.0
      %250 = vmatpush.msra.mxu0 1.0
      %251 = vmatpush.msra.mxu0 1.0
      %252 = vmatpush.msra.mxu0 1.0
      %253 = vmatpush.msra.mxu0 1.0
      %254 = vmatpush.msra.mxu0 1.0
      %255 = vmatpush.msra.mxu0 1.0
      %256 = vmatpush.msra.mxu0 1.0
      %v257 = vand.u32 %v225, 4294901760
      %v258 = vsub.f32 %v225, %v257
      %v259 = vand.u32 %v258, 4294901760
      %v260 = vsub.f32 %v258, %v259
      %v261 = vand.u32 %v260, 4294901760
      %262 = vmatmul.f32.gmra.mxu0 %v261
      %v263 = vpop.f32.mrf.mxu0
      %v264 = vadd.f32 0.0, %v263
      %v265 = vand.u32 %v227, 4294901760
      %v266 = vsub.f32 %v227, %v265
      %v267 = vand.u32 %v266, 4294901760
      %v268 = vsub.f32 %v266, %v267
      %v269 = vand.u32 %v268, 4294901760
      %270 = vmatmul.f32.gmra.mxu0 %v269
      %v271 = vpop.f32.mrf.mxu0
      %v272 = vadd.f32 0.0, %v271
      %v273 = vand.u32 %v229, 4294901760
      %v274 = vsub.f32 %v229, %v273
      %v275 = vand.u32 %v274, 4294901760
      %v276 = vsub.f32 %v274, %v275
      %v277 = vand.u32 %v276, 4294901760
      %278 = vmatmul.f32.gmra.mxu0 %v277
      %v279 = vpop.f32.mrf.mxu0
      %v280 = vadd.f32 0.0, %v279
      %v281 = vand.u32 %v231, 4294901760
      %v282 = vsub.f32 %v231, %v281
      %v283 = vand.u32 %v282, 4294901760
      %v284 = vsub.f32 %v282, %v283
      %v285 = vand.u32 %v284, 4294901760
      %286 = vmatmul.f32.gmra.mxu0 %v285
      %v287 = vpop.f32.mrf.mxu0
      %v288 = vadd.f32 0.0, %v287
      %v289 = vand.u32 %v233, 4294901760
      %v290 = vsub.f32 %v233, %v289
      %v291 = vand.u32 %v290, 4294901760
      %v292 = vsub.f32 %v290, %v291
      %v293 = vand.u32 %v292, 4294901760
      %294 = vmatmul.f32.gmra.mxu0 %v293
      %v295 = vpop.f32.mrf.mxu0
      %v296 = vadd.f32 0.0, %v295
      %v297 = vand.u32 %v235, 4294901760
      %v298 = vsub.f32 %v235, %v297
      %v299 = vand.u32 %v298, 4294901760
      %v300 = vsub.f32 %v298, %v299
      %v301 = vand.u32 %v300, 4294901760
      %302 = vmatmul.f32.gmra.mxu0 %v301
      %v303 = vpop.f32.mrf.mxu0
      %v304 = vadd.f32 0.0, %v303
      %v305 = vand.u32 %v237, 4294901760
      %v306 = vsub.f32 %v237, %v305
      %v307 = vand.u32 %v306, 4294901760
      %v308 = vsub.f32 %v306, %v307
      %v309 = vand.u32 %v308, 4294901760
      %310 = vmatmul.f32.gmra.mxu0 %v309
      %v311 = vpop.f32.mrf.mxu0
      %v312 = vadd.f32 0.0, %v311
      %v313 = vand.u32 %v239, 4294901760
      %v314 = vsub.f32 %v239, %v313
      %v315 = vand.u32 %v314, 4294901760
      %v316 = vsub.f32 %v314, %v315
      %v317 = vand.u32 %v316, 4294901760
      %318 = vmatmul.f32.gmra.mxu0 %v317
      %v319 = vpop.f32.mrf.mxu0
      %v320 = vadd.f32 0.0, %v319
      %321 = vdwg.mxu0
      %322 = vmatpush.msra.mxu0 0.0
      %323 = vmatpush.msra.mxu0 0.0
      %324 = vmatpush.msra.mxu0 0.0
      %325 = vmatpush.msra.mxu0 0.0
      %326 = vmatpush.msra.mxu0 0.0
      %327 = vmatpush.msra.mxu0 0.0
      %328 = vmatpush.msra.mxu0 0.0
      %329 = vmatpush.msra.mxu0 0.0
      %330 = vmatpush.msra.mxu0 0.0
      %331 = vmatpush.msra.mxu0 0.0
      %332 = vmatpush.msra.mxu0 0.0
      %333 = vmatpush.msra.mxu0 0.0
      %334 = vmatpush.msra.mxu0 0.0
      %335 = vmatpush.msra.mxu0 0.0
      %336 = vmatpush.msra.mxu0 0.0
      %337 = vmatpush.msra.mxu0 0.0
      %v338 = vand.u32 %v225, 4294901760
      %339 = vmatmul.f32.gmra.mxu0 %v338
      %v340 = vpop.f32.mrf.mxu0
      %v341 = vadd.f32 %v264, %v340
      %v342 = vand.u32 %v227, 4294901760
      %343 = vmatmul.f32.gmra.mxu0 %v342
      %v344 = vpop.f32.mrf.mxu0
      %v345 = vadd.f32 %v272, %v344
      %v346 = vand.u32 %v229, 4294901760
      %347 = vmatmul.f32.gmra.mxu0 %v346
      %v348 = vpop.f32.mrf.mxu0
      %v349 = vadd.f32 %v280, %v348
      %v350 = vand.u32 %v231, 4294901760
      %351 = vmatmul.f32.gmra.mxu0 %v350
      %v352 = vpop.f32.mrf.mxu0
      %v353 = vadd.f32 %v288, %v352
      %v354 = vand.u32 %v233, 4294901760
      %355 = vmatmul.f32.gmra.mxu0 %v354
      %v356 = vpop.f32.mrf.mxu0
      %v357 = vadd.f32 %v296, %v356
      %v358 = vand.u32 %v235, 4294901760
      %359 = vmatmul.f32.gmra.mxu0 %v358
      %v360 = vpop.f32.mrf.mxu0
      %v361 = vadd.f32 %v304, %v360
      %v362 = vand.u32 %v237, 4294901760
      %363 = vmatmul.f32.gmra.mxu0 %v362
      %v364 = vpop.f32.mrf.mxu0
      %v365 = vadd.f32 %v312, %v364
      %v366 = vand.u32 %v239, 4294901760
      %367 = vmatmul.f32.gmra.mxu0 %v366
      %v368 = vpop.f32.mrf.mxu0
      %v369 = vadd.f32 %v320, %v368
      %370 = vdwg.mxu0
      %371 = vmatpush.msra.mxu0 0.0
      %372 = vmatpush.msra.mxu0 0.0
      %373 = vmatpush.msra.mxu0 0.0
      %374 = vmatpush.msra.mxu0 0.0
      %375 = vmatpush.msra.mxu0 0.0
      %376 = vmatpush.msra.mxu0 0.0
      %377 = vmatpush.msra.mxu0 0.0
      %378 = vmatpush.msra.mxu0 0.0
      %379 = vmatpush.msra.mxu0 0.0
      %380 = vmatpush.msra.mxu0 0.0
      %381 = vmatpush.msra.mxu0 0.0
      %382 = vmatpush.msra.mxu0 0.0
      %383 = vmatpush.msra.mxu0 0.0
      %384 = vmatpush.msra.mxu0 0.0
      %385 = vmatpush.msra.mxu0 0.0
      %386 = vmatpush.msra.mxu0 0.0
      %v387 = vand.u32 %v225, 4294901760
      %v388 = vsub.f32 %v225, %v387
      %389 = vmatmul.f32.gmra.mxu0 %v388
      %v390 = vpop.f32.mrf.mxu0
      %v391 = vadd.f32 %v341, %v390
      %v392 = vand.u32 %v227, 4294901760
      %v393 = vsub.f32 %v227, %v392
      %394 = vmatmul.f32.gmra.mxu0 %v393
      %v395 = vpop.f32.mrf.mxu0
      %v396 = vadd.f32 %v345, %v395
      %v397 = vand.u32 %v229, 4294901760
      %v398 = vsub.f32 %v229, %v397
      %399 = vmatmul.f32.gmra.mxu0 %v398
      %v400 = vpop.f32.mrf.mxu0
      %v401 = vadd.f32 %v349, %v400
      %v402 = vand.u32 %v231, 4294901760
      %v403 = vsub.f32 %v231, %v402
      %404 = vmatmul.f32.gmra.mxu0 %v403
      %v405 = vpop.f32.mrf.mxu0
      %v406 = vadd.f32 %v353, %v405
      %v407 = vand.u32 %v233, 4294901760
      %v408 = vsub.f32 %v233, %v407
      %409 = vmatmul.f32.gmra.mxu0 %v408
      %v410 = vpop.f32.mrf.mxu0
      %v411 = vadd.f32 %v357, %v410
      %v412 = vand.u32 %v235, 4294901760
      %v413 = vsub.f32 %v235, %v412
      %414 = vmatmul.f32.gmra.mxu0 %v413
      %v415 = vpop.f32.mrf.mxu0
      %v416 = vadd.f32 %v361, %v415
      %v417 = vand.u32 %v237, 4294901760
      %v418 = vsub.f32 %v237, %v417
      %419 = vmatmul.f32.gmra.mxu0 %v418
      %v420 = vpop.f32.mrf.mxu0
      %v421 = vadd.f32 %v365, %v420
      %v422 = vand.u32 %v239, 4294901760
      %v423 = vsub.f32 %v239, %v422
      %424 = vmatmul.f32.gmra.mxu0 %v423
      %v425 = vpop.f32.mrf.mxu0
      %v426 = vadd.f32 %v369, %v425
      %427 = vdwg.mxu0
      %428 = vmatpush.msra.mxu0 1.0
      %429 = vmatpush.msra.mxu0 1.0
      %430 = vmatpush.msra.mxu0 1.0
      %431 = vmatpush.msra.mxu0 1.0
      %432 = vmatpush.msra.mxu0 1.0
      %433 = vmatpush.msra.mxu0 1.0
      %434 = vmatpush.msra.mxu0 1.0
      %435 = vmatpush.msra.mxu0 1.0
      %436 = vmatpush.msra.mxu0 1.0
      %437 = vmatpush.msra.mxu0 1.0
      %438 = vmatpush.msra.mxu0 1.0
      %439 = vmatpush.msra.mxu0 1.0
      %440 = vmatpush.msra.mxu0 1.0
      %441 = vmatpush.msra.mxu0 1.0
      %442 = vmatpush.msra.mxu0 1.0
      %443 = vmatpush.msra.mxu0 1.0
      %v444 = vand.u32 %v225, 4294901760
      %v445 = vsub.f32 %v225, %v444
      %v446 = vand.u32 %v445, 4294901760
      %447 = vmatmul.f32.gmra.mxu0 %v446
      %v448 = vpop.f32.mrf.mxu0
      %v449 = vadd.f32 %v391, %v448
      %v450 = vand.u32 %v227, 4294901760
      %v451 = vsub.f32 %v227, %v450
      %v452 = vand.u32 %v451, 4294901760
      %453 = vmatmul.f32.gmra.mxu0 %v452
      %v454 = vpop.f32.mrf.mxu0
      %v455 = vadd.f32 %v396, %v454
      %v456 = vand.u32 %v229, 4294901760
      %v457 = vsub.f32 %v229, %v456
      %v458 = vand.u32 %v457, 4294901760
      %459 = vmatmul.f32.gmra.mxu0 %v458
      %v460 = vpop.f32.mrf.mxu0
      %v461 = vadd.f32 %v401, %v460
      %v462 = vand.u32 %v231, 4294901760
      %v463 = vsub.f32 %v231, %v462
      %v464 = vand.u32 %v463, 4294901760
      %465 = vmatmul.f32.gmra.mxu0 %v464
      %v466 = vpop.f32.mrf.mxu0
      %v467 = vadd.f32 %v406, %v466
      %v468 = vand.u32 %v233, 4294901760
      %v469 = vsub.f32 %v233, %v468
      %v470 = vand.u32 %v469, 4294901760
      %471 = vmatmul.f32.gmra.mxu0 %v470
      %v472 = vpop.f32.mrf.mxu0
      %v473 = vadd.f32 %v411, %v472
      %v474 = vand.u32 %v235, 4294901760
      %v475 = vsub.f32 %v235, %v474
      %v476 = vand.u32 %v475, 4294901760
      %477 = vmatmul.f32.gmra.mxu0 %v476
      %v478 = vpop.f32.mrf.mxu0
      %v479 = vadd.f32 %v416, %v478
      %v480 = vand.u32 %v237, 4294901760
      %v481 = vsub.f32 %v237, %v480
      %v482 = vand.u32 %v481, 4294901760
      %483 = vmatmul.f32.gmra.mxu0 %v482
      %v484 = vpop.f32.mrf.mxu0
      %v485 = vadd.f32 %v421, %v484
      %v486 = vand.u32 %v239, 4294901760
      %v487 = vsub.f32 %v239, %v486
      %v488 = vand.u32 %v487, 4294901760
      %489 = vmatmul.f32.gmra.mxu0 %v488
      %v490 = vpop.f32.mrf.mxu0
      %v491 = vadd.f32 %v426, %v490
      %492 = vdwg.mxu0
      %493 = vmatpush.msra.mxu0 0.0
      %494 = vmatpush.msra.mxu0 0.0
      %495 = vmatpush.msra.mxu0 0.0
      %496 = vmatpush.msra.mxu0 0.0
      %497 = vmatpush.msra.mxu0 0.0
      %498 = vmatpush.msra.mxu0 0.0
      %499 = vmatpush.msra.mxu0 0.0
      %500 = vmatpush.msra.mxu0 0.0
      %501 = vmatpush.msra.mxu0 0.0
      %502 = vmatpush.msra.mxu0 0.0
      %503 = vmatpush.msra.mxu0 0.0
      %504 = vmatpush.msra.mxu0 0.0
      %505 = vmatpush.msra.mxu0 0.0
      %506 = vmatpush.msra.mxu0 0.0
      %507 = vmatpush.msra.mxu0 0.0
      %508 = vmatpush.msra.mxu0 0.0
      %v509 = vand.u32 %v225, 4294901760
      %510 = vmatmul.f32.gmra.mxu0 %v509
      %v511 = vpop.f32.mrf.mxu0
      %v512 = vadd.f32 %v449, %v511
      %v513 = vand.u32 %v227, 4294901760
      %514 = vmatmul.f32.gmra.mxu0 %v513
      %v515 = vpop.f32.mrf.mxu0
      %v516 = vadd.f32 %v455, %v515
      %v517 = vand.u32 %v229, 4294901760
      %518 = vmatmul.f32.gmra.mxu0 %v517
      %v519 = vpop.f32.mrf.mxu0
      %v520 = vadd.f32 %v461, %v519
      %v521 = vand.u32 %v231, 4294901760
      %522 = vmatmul.f32.gmra.mxu0 %v521
      %v523 = vpop.f32.mrf.mxu0
      %v524 = vadd.f32 %v467, %v523
      %v525 = vand.u32 %v233, 4294901760
      %526 = vmatmul.f32.gmra.mxu0 %v525
      %v527 = vpop.f32.mrf.mxu0
      %v528 = vadd.f32 %v473, %v527
      %v529 = vand.u32 %v235, 4294901760
      %530 = vmatmul.f32.gmra.mxu0 %v529
      %v531 = vpop.f32.mrf.mxu0
      %v532 = vadd.f32 %v479, %v531
      %v533 = vand.u32 %v237, 4294901760
      %534 = vmatmul.f32.gmra.mxu0 %v533
      %v535 = vpop.f32.mrf.mxu0
      %v536 = vadd.f32 %v485, %v535
      %v537 = vand.u32 %v239, 4294901760
      %538 = vmatmul.f32.gmra.mxu0 %v537
      %v539 = vpop.f32.mrf.mxu0
      %v540 = vadd.f32 %v491, %v539
      %541 = vdwg.mxu0
      %542 = vmatpush.msra.mxu0 1.0
      %543 = vmatpush.msra.mxu0 1.0
      %544 = vmatpush.msra.mxu0 1.0
      %545 = vmatpush.msra.mxu0 1.0
      %546 = vmatpush.msra.mxu0 1.0
      %547 = vmatpush.msra.mxu0 1.0
      %548 = vmatpush.msra.mxu0 1.0
      %549 = vmatpush.msra.mxu0 1.0
      %550 = vmatpush.msra.mxu0 1.0
      %551 = vmatpush.msra.mxu0 1.0
      %552 = vmatpush.msra.mxu0 1.0
      %553 = vmatpush.msra.mxu0 1.0
      %554 = vmatpush.msra.mxu0 1.0
      %555 = vmatpush.msra.mxu0 1.0
      %556 = vmatpush.msra.mxu0 1.0
      %557 = vmatpush.msra.mxu0 1.0
      %v558 = vand.u32 %v225, 4294901760
      %559 = vmatmul.f32.gmra.mxu0 %v558
      %v560 = vpop.f32.mrf.mxu0
      %v561 = vadd.f32 %v512, %v560
      %v562 = vand.u32 %v227, 4294901760
      %563 = vmatmul.f32.gmra.mxu0 %v562
      %v564 = vpop.f32.mrf.mxu0
      %v565 = vadd.f32 %v516, %v564
      %v566 = vand.u32 %v229, 4294901760
      %567 = vmatmul.f32.gmra.mxu0 %v566
      %v568 = vpop.f32.mrf.mxu0
      %v569 = vadd.f32 %v520, %v568
      %v570 = vand.u32 %v231, 4294901760
      %571 = vmatmul.f32.gmra.mxu0 %v570
      %v572 = vpop.f32.mrf.mxu0
      %v573 = vadd.f32 %v524, %v572
      %v574 = vand.u32 %v233, 4294901760
      %575 = vmatmul.f32.gmra.mxu0 %v574
      %v576 = vpop.f32.mrf.mxu0
      %v577 = vadd.f32 %v528, %v576
      %v578 = vand.u32 %v235, 4294901760
      %579 = vmatmul.f32.gmra.mxu0 %v578
      %v580 = vpop.f32.mrf.mxu0
      %v581 = vadd.f32 %v532, %v580
      %v582 = vand.u32 %v237, 4294901760
      %583 = vmatmul.f32.gmra.mxu0 %v582
      %v584 = vpop.f32.mrf.mxu0
      %v585 = vadd.f32 %v536, %v584
      %v586 = vand.u32 %v239, 4294901760
      %587 = vmatmul.f32.gmra.mxu0 %v586
      %v588 = vpop.f32.mrf.mxu0
      %v589 = vadd.f32 %v540, %v588
      %590 = vdwg.mxu0
      %591 = vmatpush.msra.mxu0 1.0
      %592 = vmatpush.msra.mxu0 1.0
      %593 = vmatpush.msra.mxu0 1.0
      %594 = vmatpush.msra.mxu0 1.0
      %595 = vmatpush.msra.mxu0 1.0
      %596 = vmatpush.msra.mxu0 1.0
      %597 = vmatpush.msra.mxu0 1.0
      %598 = vmatpush.msra.mxu0 1.0
      %599 = vmatpush.msra.mxu0 1.0
      %600 = vmatpush.msra.mxu0 1.0
      %601 = vmatpush.msra.mxu0 1.0
      %602 = vmatpush.msra.mxu0 1.0
      %603 = vmatpush.msra.mxu0 1.0
      %604 = vmatpush.msra.mxu0 1.0
      %605 = vmatpush.msra.mxu0 1.0
      %606 = vmatpush.msra.mxu0 1.0
      %v607 = vand.u32 %v226, 4294901760
      %v608 = vsub.f32 %v226, %v607
      %v609 = vand.u32 %v608, 4294901760
      %v610 = vsub.f32 %v608, %v609
      %v611 = vand.u32 %v610, 4294901760
      %612 = vmatmul.f32.gmra.mxu0 %v611
      %v613 = vpop.f32.mrf.mxu0
      %v614 = vadd.f32 %v561, %v613
      %v615 = vand.u32 %v228, 4294901760
      %v616 = vsub.f32 %v228, %v615
      %v617 = vand.u32 %v616, 4294901760
      %v618 = vsub.f32 %v616, %v617
      %v619 = vand.u32 %v618, 4294901760
      %620 = vmatmul.f32.gmra.mxu0 %v619
      %v621 = vpop.f32.mrf.mxu0
      %v622 = vadd.f32 %v565, %v621
      %v623 = vand.u32 %v230, 4294901760
      %v624 = vsub.f32 %v230, %v623
      %v625 = vand.u32 %v624, 4294901760
      %v626 = vsub.f32 %v624, %v625
      %v627 = vand.u32 %v626, 4294901760
      %628 = vmatmul.f32.gmra.mxu0 %v627
      %v629 = vpop.f32.mrf.mxu0
      %v630 = vadd.f32 %v569, %v629
      %v631 = vand.u32 %v232, 4294901760
      %v632 = vsub.f32 %v232, %v631
      %v633 = vand.u32 %v632, 4294901760
      %v634 = vsub.f32 %v632, %v633
      %v635 = vand.u32 %v634, 4294901760
      %636 = vmatmul.f32.gmra.mxu0 %v635
      %v637 = vpop.f32.mrf.mxu0
      %v638 = vadd.f32 %v573, %v637
      %v639 = vand.u32 %v234, 4294901760
      %v640 = vsub.f32 %v234, %v639
      %v641 = vand.u32 %v640, 4294901760
      %v642 = vsub.f32 %v640, %v641
      %v643 = vand.u32 %v642, 4294901760
      %644 = vmatmul.f32.gmra.mxu0 %v643
      %v645 = vpop.f32.mrf.mxu0
      %v646 = vadd.f32 %v577, %v645
      %v647 = vand.u32 %v236, 4294901760
      %v648 = vsub.f32 %v236, %v647
      %v649 = vand.u32 %v648, 4294901760
      %v650 = vsub.f32 %v648, %v649
      %v651 = vand.u32 %v650, 4294901760
      %652 = vmatmul.f32.gmra.mxu0 %v651
      %v653 = vpop.f32.mrf.mxu0
      %v654 = vadd.f32 %v581, %v653
      %v655 = vand.u32 %v238, 4294901760
      %v656 = vsub.f32 %v238, %v655
      %v657 = vand.u32 %v656, 4294901760
      %v658 = vsub.f32 %v656, %v657
      %v659 = vand.u32 %v658, 4294901760
      %660 = vmatmul.f32.gmra.mxu0 %v659
      %v661 = vpop.f32.mrf.mxu0
      %v662 = vadd.f32 %v585, %v661
      %v663 = vand.u32 %v240, 4294901760
      %v664 = vsub.f32 %v240, %v663
      %v665 = vand.u32 %v664, 4294901760
      %v666 = vsub.f32 %v664, %v665
      %v667 = vand.u32 %v666, 4294901760
      %668 = vmatmul.f32.gmra.mxu0 %v667
      %v669 = vpop.f32.mrf.mxu0
      %v670 = vadd.f32 %v589, %v669
      %671 = vdwg.mxu0
      %672 = vmatpush.msra.mxu0 0.0
      %673 = vmatpush.msra.mxu0 0.0
      %674 = vmatpush.msra.mxu0 0.0
      %675 = vmatpush.msra.mxu0 0.0
      %676 = vmatpush.msra.mxu0 0.0
      %677 = vmatpush.msra.mxu0 0.0
      %678 = vmatpush.msra.mxu0 0.0
      %679 = vmatpush.msra.mxu0 0.0
      %680 = vmatpush.msra.mxu0 0.0
      %681 = vmatpush.msra.mxu0 0.0
      %682 = vmatpush.msra.mxu0 0.0
      %683 = vmatpush.msra.mxu0 0.0
      %684 = vmatpush.msra.mxu0 0.0
      %685 = vmatpush.msra.mxu0 0.0
      %686 = vmatpush.msra.mxu0 0.0
      %687 = vmatpush.msra.mxu0 0.0
      %v688 = vand.u32 %v226, 4294901760
      %689 = vmatmul.f32.gmra.mxu0 %v688
      %v690 = vpop.f32.mrf.mxu0
      %v691 = vadd.f32 %v614, %v690
      %v692 = vand.u32 %v228, 4294901760
      %693 = vmatmul.f32.gmra.mxu0 %v692
      %v694 = vpop.f32.mrf.mxu0
      %v695 = vadd.f32 %v622, %v694
      %v696 = vand.u32 %v230, 4294901760
      %697 = vmatmul.f32.gmra.mxu0 %v696
      %v698 = vpop.f32.mrf.mxu0
      %v699 = vadd.f32 %v630, %v698
      %v700 = vand.u32 %v232, 4294901760
      %701 = vmatmul.f32.gmra.mxu0 %v700
      %v702 = vpop.f32.mrf.mxu0
      %v703 = vadd.f32 %v638, %v702
      %v704 = vand.u32 %v234, 4294901760
      %705 = vmatmul.f32.gmra.mxu0 %v704
      %v706 = vpop.f32.mrf.mxu0
      %v707 = vadd.f32 %v646, %v706
      %v708 = vand.u32 %v236, 4294901760
      %709 = vmatmul.f32.gmra.mxu0 %v708
      %v710 = vpop.f32.mrf.mxu0
      %v711 = vadd.f32 %v654, %v710
      %v712 = vand.u32 %v238, 4294901760
      %713 = vmatmul.f32.gmra.mxu0 %v712
      %v714 = vpop.f32.mrf.mxu0
      %v715 = vadd.f32 %v662, %v714
      %v716 = vand.u32 %v240, 4294901760
      %717 = vmatmul.f32.gmra.mxu0 %v716
      %v718 = vpop.f32.mrf.mxu0
      %v719 = vadd.f32 %v670, %v718
      %720 = vdwg.mxu0
      %721 = vmatpush.msra.mxu0 0.0
      %722 = vmatpush.msra.mxu0 0.0
      %723 = vmatpush.msra.mxu0 0.0
      %724 = vmatpush.msra.mxu0 0.0
      %725 = vmatpush.msra.mxu0 0.0
      %726 = vmatpush.msra.mxu0 0.0
      %727 = vmatpush.msra.mxu0 0.0
      %728 = vmatpush.msra.mxu0 0.0
      %729 = vmatpush.msra.mxu0 0.0
      %730 = vmatpush.msra.mxu0 0.0
      %731 = vmatpush.msra.mxu0 0.0
      %732 = vmatpush.msra.mxu0 0.0
      %733 = vmatpush.msra.mxu0 0.0
      %734 = vmatpush.msra.mxu0 0.0
      %735 = vmatpush.msra.mxu0 0.0
      %736 = vmatpush.msra.mxu0 0.0
      %v737 = vand.u32 %v226, 4294901760
      %v738 = vsub.f32 %v226, %v737
      %739 = vmatmul.f32.gmra.mxu0 %v738
      %v740 = vpop.f32.mrf.mxu0
      %v741 = vadd.f32 %v691, %v740
      %v742 = vand.u32 %v228, 4294901760
      %v743 = vsub.f32 %v228, %v742
      %744 = vmatmul.f32.gmra.mxu0 %v743
      %v745 = vpop.f32.mrf.mxu0
      %v746 = vadd.f32 %v695, %v745
      %v747 = vand.u32 %v230, 4294901760
      %v748 = vsub.f32 %v230, %v747
      %749 = vmatmul.f32.gmra.mxu0 %v748
      %v750 = vpop.f32.mrf.mxu0
      %v751 = vadd.f32 %v699, %v750
      %v752 = vand.u32 %v232, 4294901760
      %v753 = vsub.f32 %v232, %v752
      %754 = vmatmul.f32.gmra.mxu0 %v753
      %v755 = vpop.f32.mrf.mxu0
      %v756 = vadd.f32 %v703, %v755
      %v757 = vand.u32 %v234, 4294901760
      %v758 = vsub.f32 %v234, %v757
      %759 = vmatmul.f32.gmra.mxu0 %v758
      %v760 = vpop.f32.mrf.mxu0
      %v761 = vadd.f32 %v707, %v760
      %v762 = vand.u32 %v236, 4294901760
      %v763 = vsub.f32 %v236, %v762
      %764 = vmatmul.f32.gmra.mxu0 %v763
      %v765 = vpop.f32.mrf.mxu0
      %v766 = vadd.f32 %v711, %v765
      %v767 = vand.u32 %v238, 4294901760
      %v768 = vsub.f32 %v238, %v767
      %769 = vmatmul.f32.gmra.mxu0 %v768
      %v770 = vpop.f32.mrf.mxu0
      %v771 = vadd.f32 %v715, %v770
      %v772 = vand.u32 %v240, 4294901760
      %v773 = vsub.f32 %v240, %v772
      %774 = vmatmul.f32.gmra.mxu0 %v773
      %v775 = vpop.f32.mrf.mxu0
      %v776 = vadd.f32 %v719, %v775
      %777 = vdwg.mxu0
      %778 = vmatpush.msra.mxu0 1.0
      %779 = vmatpush.msra.mxu0 1.0
      %780 = vmatpush.msra.mxu0 1.0
      %781 = vmatpush.msra.mxu0 1.0
      %782 = vmatpush.msra.mxu0 1.0
      %783 = vmatpush.msra.mxu0 1.0
      %784 = vmatpush.msra.mxu0 1.0
      %785 = vmatpush.msra.mxu0 1.0
      %786 = vmatpush.msra.mxu0 1.0
      %787 = vmatpush.msra.mxu0 1.0
      %788 = vmatpush.msra.mxu0 1.0
      %789 = vmatpush.msra.mxu0 1.0
      %790 = vmatpush.msra.mxu0 1.0
      %791 = vmatpush.msra.mxu0 1.0
      %792 = vmatpush.msra.mxu0 1.0
      %793 = vmatpush.msra.mxu0 1.0
      %v794 = vand.u32 %v226, 4294901760
      %v795 = vsub.f32 %v226, %v794
      %v796 = vand.u32 %v795, 4294901760
      %797 = vmatmul.f32.gmra.mxu0 %v796
      %v798 = vpop.f32.mrf.mxu0
      %v799 = vadd.f32 %v741, %v798
      %v800 = vand.u32 %v228, 4294901760
      %v801 = vsub.f32 %v228, %v800
      %v802 = vand.u32 %v801, 4294901760
      %803 = vmatmul.f32.gmra.mxu0 %v802
      %v804 = vpop.f32.mrf.mxu0
      %v805 = vadd.f32 %v746, %v804
      %v806 = vand.u32 %v230, 4294901760
      %v807 = vsub.f32 %v230, %v806
      %v808 = vand.u32 %v807, 4294901760
      %809 = vmatmul.f32.gmra.mxu0 %v808
      %v810 = vpop.f32.mrf.mxu0
      %v811 = vadd.f32 %v751, %v810
      %v812 = vand.u32 %v232, 4294901760
      %v813 = vsub.f32 %v232, %v812
      %v814 = vand.u32 %v813, 4294901760
      %815 = vmatmul.f32.gmra.mxu0 %v814
      %v816 = vpop.f32.mrf.mxu0
      %v817 = vadd.f32 %v756, %v816
      %v818 = vand.u32 %v234, 4294901760
      %v819 = vsub.f32 %v234, %v818
      %v820 = vand.u32 %v819, 4294901760
      %821 = vmatmul.f32.gmra.mxu0 %v820
      %v822 = vpop.f32.mrf.mxu0
      %v823 = vadd.f32 %v761, %v822
      %v824 = vand.u32 %v236, 4294901760
      %v825 = vsub.f32 %v236, %v824
      %v826 = vand.u32 %v825, 4294901760
      %827 = vmatmul.f32.gmra.mxu0 %v826
      %v828 = vpop.f32.mrf.mxu0
      %v829 = vadd.f32 %v766, %v828
      %v830 = vand.u32 %v238, 4294901760
      %v831 = vsub.f32 %v238, %v830
      %v832 = vand.u32 %v831, 4294901760
      %833 = vmatmul.f32.gmra.mxu0 %v832
      %v834 = vpop.f32.mrf.mxu0
      %v835 = vadd.f32 %v771, %v834
      %v836 = vand.u32 %v240, 4294901760
      %v837 = vsub.f32 %v240, %v836
      %v838 = vand.u32 %v837, 4294901760
      %839 = vmatmul.f32.gmra.mxu0 %v838
      %v840 = vpop.f32.mrf.mxu0
      %v841 = vadd.f32 %v776, %v840
      %842 = vdwg.mxu0
      %843 = vmatpush.msra.mxu0 0.0
      %844 = vmatpush.msra.mxu0 0.0
      %845 = vmatpush.msra.mxu0 0.0
      %846 = vmatpush.msra.mxu0 0.0
      %847 = vmatpush.msra.mxu0 0.0
      %848 = vmatpush.msra.mxu0 0.0
      %849 = vmatpush.msra.mxu0 0.0
      %850 = vmatpush.msra.mxu0 0.0
      %851 = vmatpush.msra.mxu0 0.0
      %852 = vmatpush.msra.mxu0 0.0
      %853 = vmatpush.msra.mxu0 0.0
      %854 = vmatpush.msra.mxu0 0.0
      %855 = vmatpush.msra.mxu0 0.0
      %856 = vmatpush.msra.mxu0 0.0
      %857 = vmatpush.msra.mxu0 0.0
      %858 = vmatpush.msra.mxu0 0.0
      %v859 = vand.u32 %v226, 4294901760
      %860 = vmatmul.f32.gmra.mxu0 %v859
      %v861 = vpop.f32.mrf.mxu0
      %v862 = vadd.f32 %v799, %v861
      %v863 = vand.u32 %v228, 4294901760
      %864 = vmatmul.f32.gmra.mxu0 %v863
      %v865 = vpop.f32.mrf.mxu0
      %v866 = vadd.f32 %v805, %v865
      %v867 = vand.u32 %v230, 4294901760
      %868 = vmatmul.f32.gmra.mxu0 %v867
      %v869 = vpop.f32.mrf.mxu0
      %v870 = vadd.f32 %v811, %v869
      %v871 = vand.u32 %v232, 4294901760
      %872 = vmatmul.f32.gmra.mxu0 %v871
      %v873 = vpop.f32.mrf.mxu0
      %v874 = vadd.f32 %v817, %v873
      %v875 = vand.u32 %v234, 4294901760
      %876 = vmatmul.f32.gmra.mxu0 %v875
      %v877 = vpop.f32.mrf.mxu0
      %v878 = vadd.f32 %v823, %v877
      %v879 = vand.u32 %v236, 4294901760
      %880 = vmatmul.f32.gmra.mxu0 %v879
      %v881 = vpop.f32.mrf.mxu0
      %v882 = vadd.f32 %v829, %v881
      %v883 = vand.u32 %v238, 4294901760
      %884 = vmatmul.f32.gmra.mxu0 %v883
      %v885 = vpop.f32.mrf.mxu0
      %v886 = vadd.f32 %v835, %v885
      %v887 = vand.u32 %v240, 4294901760
      %888 = vmatmul.f32.gmra.mxu0 %v887
      %v889 = vpop.f32.mrf.mxu0
      %v890 = vadd.f32 %v841, %v889
      %891 = vdwg.mxu0
      %892 = vmatpush.msra.mxu0 1.0
      %893 = vmatpush.msra.mxu0 1.0
      %894 = vmatpush.msra.mxu0 1.0
      %895 = vmatpush.msra.mxu0 1.0
      %896 = vmatpush.msra.mxu0 1.0
      %897 = vmatpush.msra.mxu0 1.0
      %898 = vmatpush.msra.mxu0 1.0
      %899 = vmatpush.msra.mxu0 1.0
      %900 = vmatpush.msra.mxu0 1.0
      %901 = vmatpush.msra.mxu0 1.0
      %902 = vmatpush.msra.mxu0 1.0
      %903 = vmatpush.msra.mxu0 1.0
      %904 = vmatpush.msra.mxu0 1.0
      %905 = vmatpush.msra.mxu0 1.0
      %906 = vmatpush.msra.mxu0 1.0
      %907 = vmatpush.msra.mxu0 1.0
      %v908 = vand.u32 %v226, 4294901760
      %909 = vmatmul.f32.gmra.mxu0 %v908
      %v910 = vpop.f32.mrf.mxu0
      %v911 = vadd.f32 %v862, %v910
      %v912 = vand.u32 %v228, 4294901760
      %913 = vmatmul.f32.gmra.mxu0 %v912
      %v914 = vpop.f32.mrf.mxu0
      %v915 = vadd.f32 %v866, %v914
      %v916 = vand.u32 %v230, 4294901760
      %917 = vmatmul.f32.gmra.mxu0 %v916
      %v918 = vpop.f32.mrf.mxu0
      %v919 = vadd.f32 %v870, %v918
      %v920 = vand.u32 %v232, 4294901760
      %921 = vmatmul.f32.gmra.mxu0 %v920
      %v922 = vpop.f32.mrf.mxu0
      %v923 = vadd.f32 %v874, %v922
      %v924 = vand.u32 %v234, 4294901760
      %925 = vmatmul.f32.gmra.mxu0 %v924
      %v926 = vpop.f32.mrf.mxu0
      %v927 = vadd.f32 %v878, %v926
      %v928 = vand.u32 %v236, 4294901760
      %929 = vmatmul.f32.gmra.mxu0 %v928
      %v930 = vpop.f32.mrf.mxu0
      %v931 = vadd.f32 %v882, %v930
      %v932 = vand.u32 %v238, 4294901760
      %933 = vmatmul.f32.gmra.mxu0 %v932
      %v934 = vpop.f32.mrf.mxu0
      %v935 = vadd.f32 %v886, %v934
      %v936 = vand.u32 %v240, 4294901760
      %937 = vmatmul.f32.gmra.mxu0 %v936
      %v938 = vpop.f32.mrf.mxu0
      %v939 = vadd.f32 %v890, %v938
      %940 = vdwg.mxu0
      %v941 = vmax.f32 %v225, %v226
      %942 = vmax.xlane.f32.xlu0 %v941
      %v943 = vpop.xlane.xlu0 %942
      %v944 = vmax.f32 %v227, %v228
      %945 = vmax.xlane.f32.xlu0 %v944
      %v946 = vpop.xlane.xlu0 %945
      %v947 = vmax.f32 %v229, %v230
      %948 = vmax.xlane.f32.xlu0 %v947
      %v949 = vpop.xlane.xlu0 %948
      %v950 = vmax.f32 %v231, %v232
      %951 = vmax.xlane.f32.xlu0 %v950
      %v952 = vpop.xlane.xlu0 %951
      %v953 = vmax.f32 %v233, %v234
      %954 = vmax.xlane.f32.xlu0 %v953
      %v955 = vpop.xlane.xlu0 %954
      %v956 = vmax.f32 %v235, %v236
      %957 = vmax.xlane.f32.xlu0 %v956
      %v958 = vpop.xlane.xlu0 %957
      %v959 = vmax.f32 %v237, %v238
      %960 = vmax.xlane.f32.xlu0 %v959
      %v961 = vpop.xlane.xlu0 %960
      %v962 = vmax.f32 %v239, %v240
      %963 = vmax.xlane.f32.xlu0 %v962
      %v964 = vpop.xlane.xlu0 %963
      %v965 = vmul.f32 %v911, 0.00390625
      %v966 = vmul.f32 %v915, 0.00390625
      %v967 = vmul.f32 %v919, 0.00390625
      %v968 = vmul.f32 %v923, 0.00390625
      %v969 = vmul.f32 %v927, 0.00390625
      %v970 = vmul.f32 %v931, 0.00390625
      %v971 = vmul.f32 %v935, 0.00390625
      %v972 = vmul.f32 %v939, 0.00390625
      %v973 = vadd.f32 %v965, %v943
      %v974 = vadd.f32 %v966, %v946
      %v975 = vadd.f32 %v967, %v949
      %v976 = vadd.f32 %v968, %v952
      %v977 = vadd.f32 %v969, %v955
      %v978 = vadd.f32 %v970, %v958
      %v979 = vadd.f32 %v971, %v961
      %v980 = vadd.f32 %v972, %v964
      %v981 = vld [vmem:[%s1] sm:$0xf]
      %v982 = vld [vmem:[%s2] sm:$0xf]
      %vm983 = vcmask 523264
      %v985 = vsel %vm983, %v981, 0
      %987 = vmatpush.msra.mxu0 0.0
      %988 = vmatpush.msra.mxu0 0.0
      %989 = vmatpush.msra.mxu0 0.0
      %990 = vmatpush.msra.mxu0 0.0
      %991 = vmatpush.msra.mxu0 0.0
      %992 = vmatpush.msra.mxu0 0.0
      %993 = vmatpush.msra.mxu0 0.0
      %994 = vmatpush.msra.mxu0 0.0
      %995 = vmatpush.msra.mxu0 %v980
      %996 = vmatpush.msra.mxu0 %v979
      %997 = vmatpush.msra.mxu0 %v978
      %998 = vmatpush.msra.mxu0 %v977
      %999 = vmatpush.msra.mxu0 %v976
      %1000 = vmatpush.msra.mxu0 %v975
      %1001 = vmatpush.msra.mxu0 %v974
      %1002 = vmatpush.msra.mxu0 %v973
      %1003 = vmatmul.f32.gmra.mxu0 %v985
      %v1004 = vpop.f32.mrf.mxu0
      %v1005 = vadd.f32 %v982, %v1004
      %1006 = vdwg.mxu0
      %v1007 = vmax.f32 %v1005, 0.0
      %v1008 = vld [vmem:[%s3] sm:$0xff]
      %v1009 = vld [vmem:[%s3 + $0x8] sm:$0xff]
      %v1010 = vld [vmem:[%s3 + $0x10] sm:$0xff]
      %v1011 = vld [vmem:[%s3 + $0x18] sm:$0xff]
      %v1012 = vld [vmem:[%s3 + $0x20] sm:$0xff]
      %v1013 = vld [vmem:[%s3 + $0x28] sm:$0xff]
      %v1014 = vld [vmem:[%s3 + $0x30] sm:$0xff]
      %v1015 = vld [vmem:[%s3 + $0x38] sm:$0xff]
      %v1016 = vld [vmem:[%s4] sm:$0xff]
      %v1017 = vld [vmem:[%s4 + $0x8] sm:$0xff]
      %v1018 = vld [vmem:[%s4 + $0x10] sm:$0xff]
      %v1019 = vld [vmem:[%s4 + $0x18] sm:$0xff]
      %v1020 = vld [vmem:[%s4 + $0x20] sm:$0xff]
      %v1021 = vld [vmem:[%s4 + $0x28] sm:$0xff]
      %v1022 = vld [vmem:[%s4 + $0x30] sm:$0xff]
      %v1023 = vld [vmem:[%s4 + $0x38] sm:$0xff]
      %vm1024 = vcmask 31744
      %v1026 = vsel %vm1024, %v1008, 0
      %v1029 = vsel %vm1024, %v1009, 0
      %v1032 = vsel %vm1024, %v1010, 0
      %v1035 = vsel %vm1024, %v1011, 0
      %v1038 = vsel %vm1024, %v1012, 0
      %v1041 = vsel %vm1024, %v1013, 0
      %v1044 = vsel %vm1024, %v1014, 0
      %v1047 = vsel %vm1024, %v1015, 0
      %vm1049 = vcmask 1043456
      %v1051 = vsel %vm1049, %v1007, 0
      %1053 = vmatpush.msra.mxu0 0.0
      %1054 = vmatpush.msra.mxu0 0.0
      %1055 = vmatpush.msra.mxu0 0.0
      %1056 = vmatpush.msra.mxu0 0.0
      %1057 = vmatpush.msra.mxu0 0.0
      %1058 = vmatpush.msra.mxu0 0.0
      %1059 = vmatpush.msra.mxu0 0.0
      %1060 = vmatpush.msra.mxu0 0.0
      %1061 = vmatpush.msra.mxu0 0.0
      %1062 = vmatpush.msra.mxu0 0.0
      %1063 = vmatpush.msra.mxu0 0.0
      %1064 = vmatpush.msra.mxu0 0.0
      %1065 = vmatpush.msra.mxu0 0.0
      %1066 = vmatpush.msra.mxu0 0.0
      %1067 = vmatpush.msra.mxu0 0.0
      %1068 = vmatpush.msra.mxu0 %v1051
      %1069 = vmatmul.f32.gmra.mxu0 %v1026
      %v1070 = vpop.f32.mrf.mxu0
      %v1071 = vadd.f32 %v1016, %v1070
      %1072 = vmatmul.f32.gmra.mxu0 %v1029
      %v1073 = vpop.f32.mrf.mxu0
      %v1074 = vadd.f32 %v1017, %v1073
      %1075 = vmatmul.f32.gmra.mxu0 %v1032
      %v1076 = vpop.f32.mrf.mxu0
      %v1077 = vadd.f32 %v1018, %v1076
      %1078 = vmatmul.f32.gmra.mxu0 %v1035
      %v1079 = vpop.f32.mrf.mxu0
      %v1080 = vadd.f32 %v1019, %v1079
      %1081 = vmatmul.f32.gmra.mxu0 %v1038
      %v1082 = vpop.f32.mrf.mxu0
      %v1083 = vadd.f32 %v1020, %v1082
      %1084 = vmatmul.f32.gmra.mxu0 %v1041
      %v1085 = vpop.f32.mrf.mxu0
      %v1086 = vadd.f32 %v1021, %v1085
      %1087 = vmatmul.f32.gmra.mxu0 %v1044
      %v1088 = vpop.f32.mrf.mxu0
      %v1089 = vadd.f32 %v1022, %v1088
      %1090 = vmatmul.f32.gmra.mxu0 %v1047
      %v1091 = vpop.f32.mrf.mxu0
      %v1092 = vadd.f32 %v1023, %v1091
      %1093 = vdwg.mxu0
      %v1094 = vxor.u32 %v1071, 2147483648
      %v1095 = vxor.u32 %v1074, 2147483648
      %v1096 = vxor.u32 %v1077, 2147483648
      %v1097 = vxor.u32 %v1080, 2147483648
      %v1098 = vxor.u32 %v1083, 2147483648
      %v1099 = vxor.u32 %v1086, 2147483648
      %v1100 = vxor.u32 %v1089, 2147483648
      %v1101 = vxor.u32 %v1092, 2147483648
      %v1102 = vmul.f32 %v1094, 1.442695
      %v1103 = vpow.pop %v1102
      %v1104 = vmul.f32 %v1095, 1.442695
      %v1105 = vpow.pop %v1104
      %v1106 = vmul.f32 %v1096, 1.442695
      %v1107 = vpow.pop %v1106
      %v1108 = vmul.f32 %v1097, 1.442695
      %v1109 = vpow.pop %v1108
      %v1110 = vmul.f32 %v1098, 1.442695
      %v1111 = vpow.pop %v1110
      %v1112 = vmul.f32 %v1099, 1.442695
      %v1113 = vpow.pop %v1112
      %v1114 = vmul.f32 %v1100, 1.442695
      %v1115 = vpow.pop %v1114
      %v1116 = vmul.f32 %v1101, 1.442695
      %v1117 = vpow.pop %v1116
      %v1118 = vadd.f32 %v1103, 1.0
      %v1119 = vadd.f32 %v1105, 1.0
      %v1120 = vadd.f32 %v1107, 1.0
      %v1121 = vadd.f32 %v1109, 1.0
      %v1122 = vadd.f32 %v1111, 1.0
      %v1123 = vadd.f32 %v1113, 1.0
      %v1124 = vadd.f32 %v1115, 1.0
      %v1125 = vadd.f32 %v1117, 1.0
      %v1126 = vrcp.pop %v1118
      %v1127 = vmul.f32 %v1118, %v1126
      %v1128 = vsub.f32 1.0, %v1127
      %v1129 = vmul.f32 %v1126, %v1128
      %v1130 = vadd.f32 %v1126, %v1129
      %vm1131 = vweird.f32 %v1118
      %vm1132 = vweird.f32 %v1126
      %vm1133 = vmor %vm1131, %vm1132
      %v1134 = vsel %vm1133, %v1126, %v1130
      %v1135 = vand.u32 2147483647, %v1118
      %vm1136 = vcmp.eq.f32.partialorder %v1135, 8.507059e+37
      %v1137 = vand.u32 %v1118, 2147483648
      %v1138 = vor.u32 1.1754944e-38, %v1137
      %v1139 = vsel %vm1136, %v1138, %v1134
      %v1140 = vmul.f32 1.0, %v1139
      %v1141 = vrcp.pop %v1119
      %v1142 = vmul.f32 %v1119, %v1141
      %v1143 = vsub.f32 1.0, %v1142
      %v1144 = vmul.f32 %v1141, %v1143
      %v1145 = vadd.f32 %v1141, %v1144
      %vm1146 = vweird.f32 %v1119
      %vm1147 = vweird.f32 %v1141
      %vm1148 = vmor %vm1146, %vm1147
      %v1149 = vsel %vm1148, %v1141, %v1145
      %v1150 = vand.u32 2147483647, %v1119
      %vm1151 = vcmp.eq.f32.partialorder %v1150, 8.507059e+37
      %v1152 = vand.u32 %v1119, 2147483648
      %v1153 = vor.u32 1.1754944e-38, %v1152
      %v1154 = vsel %vm1151, %v1153, %v1149
      %v1155 = vmul.f32 1.0, %v1154
      %v1156 = vrcp.pop %v1120
      %v1157 = vmul.f32 %v1120, %v1156
      %v1158 = vsub.f32 1.0, %v1157
      %v1159 = vmul.f32 %v1156, %v1158
      %v1160 = vadd.f32 %v1156, %v1159
      %vm1161 = vweird.f32 %v1120
      %vm1162 = vweird.f32 %v1156
      %vm1163 = vmor %vm1161, %vm1162
      %v1164 = vsel %vm1163, %v1156, %v1160
      %v1165 = vand.u32 2147483647, %v1120
      %vm1166 = vcmp.eq.f32.partialorder %v1165, 8.507059e+37
      %v1167 = vand.u32 %v1120, 2147483648
      %v1168 = vor.u32 1.1754944e-38, %v1167
      %v1169 = vsel %vm1166, %v1168, %v1164
      %v1170 = vmul.f32 1.0, %v1169
      %v1171 = vrcp.pop %v1121
      %v1172 = vmul.f32 %v1121, %v1171
      %v1173 = vsub.f32 1.0, %v1172
      %v1174 = vmul.f32 %v1171, %v1173
      %v1175 = vadd.f32 %v1171, %v1174
      %vm1176 = vweird.f32 %v1121
      %vm1177 = vweird.f32 %v1171
      %vm1178 = vmor %vm1176, %vm1177
      %v1179 = vsel %vm1178, %v1171, %v1175
      %v1180 = vand.u32 2147483647, %v1121
      %vm1181 = vcmp.eq.f32.partialorder %v1180, 8.507059e+37
      %v1182 = vand.u32 %v1121, 2147483648
      %v1183 = vor.u32 1.1754944e-38, %v1182
      %v1184 = vsel %vm1181, %v1183, %v1179
      %v1185 = vmul.f32 1.0, %v1184
      %v1186 = vrcp.pop %v1122
      %v1187 = vmul.f32 %v1122, %v1186
      %v1188 = vsub.f32 1.0, %v1187
      %v1189 = vmul.f32 %v1186, %v1188
      %v1190 = vadd.f32 %v1186, %v1189
      %vm1191 = vweird.f32 %v1122
      %vm1192 = vweird.f32 %v1186
      %vm1193 = vmor %vm1191, %vm1192
      %v1194 = vsel %vm1193, %v1186, %v1190
      %v1195 = vand.u32 2147483647, %v1122
      %vm1196 = vcmp.eq.f32.partialorder %v1195, 8.507059e+37
      %v1197 = vand.u32 %v1122, 2147483648
      %v1198 = vor.u32 1.1754944e-38, %v1197
      %v1199 = vsel %vm1196, %v1198, %v1194
      %v1200 = vmul.f32 1.0, %v1199
      %v1201 = vrcp.pop %v1123
      %v1202 = vmul.f32 %v1123, %v1201
      %v1203 = vsub.f32 1.0, %v1202
      %v1204 = vmul.f32 %v1201, %v1203
      %v1205 = vadd.f32 %v1201, %v1204
      %vm1206 = vweird.f32 %v1123
      %vm1207 = vweird.f32 %v1201
      %vm1208 = vmor %vm1206, %vm1207
      %v1209 = vsel %vm1208, %v1201, %v1205
      %v1210 = vand.u32 2147483647, %v1123
      %vm1211 = vcmp.eq.f32.partialorder %v1210, 8.507059e+37
      %v1212 = vand.u32 %v1123, 2147483648
      %v1213 = vor.u32 1.1754944e-38, %v1212
      %v1214 = vsel %vm1211, %v1213, %v1209
      %v1215 = vmul.f32 1.0, %v1214
      %v1216 = vrcp.pop %v1124
      %v1217 = vmul.f32 %v1124, %v1216
      %v1218 = vsub.f32 1.0, %v1217
      %v1219 = vmul.f32 %v1216, %v1218
      %v1220 = vadd.f32 %v1216, %v1219
      %vm1221 = vweird.f32 %v1124
      %vm1222 = vweird.f32 %v1216
      %vm1223 = vmor %vm1221, %vm1222
      %v1224 = vsel %vm1223, %v1216, %v1220
      %v1225 = vand.u32 2147483647, %v1124
      %vm1226 = vcmp.eq.f32.partialorder %v1225, 8.507059e+37
      %v1227 = vand.u32 %v1124, 2147483648
      %v1228 = vor.u32 1.1754944e-38, %v1227
      %v1229 = vsel %vm1226, %v1228, %v1224
      %v1230 = vmul.f32 1.0, %v1229
      %v1231 = vrcp.pop %v1125
      %v1232 = vmul.f32 %v1125, %v1231
      %v1233 = vsub.f32 1.0, %v1232
      %v1234 = vmul.f32 %v1231, %v1233
      %v1235 = vadd.f32 %v1231, %v1234
      %vm1236 = vweird.f32 %v1125
      %vm1237 = vweird.f32 %v1231
      %vm1238 = vmor %vm1236, %vm1237
      %v1239 = vsel %vm1238, %v1231, %v1235
      %v1240 = vand.u32 2147483647, %v1125
      %vm1241 = vcmp.eq.f32.partialorder %v1240, 8.507059e+37
      %v1242 = vand.u32 %v1125, 2147483648
      %v1243 = vor.u32 1.1754944e-38, %v1242
      %v1244 = vsel %vm1241, %v1243, %v1239
      %v1245 = vmul.f32 1.0, %v1244
      %v1246 = vadd.f32 %v1140, 1.0
      %v1247 = vadd.f32 %v1155, 1.0
      %v1248 = vadd.f32 %v1170, 1.0
      %v1249 = vadd.f32 %v1185, 1.0
      %v1250 = vadd.f32 %v1200, 1.0
      %v1251 = vadd.f32 %v1215, 1.0
      %v1252 = vadd.f32 %v1230, 1.0
      %v1253 = vadd.f32 %v1245, 1.0
      %1255 = vset.pattern.permute.xlu0 0
      %1256 = vperm.xlu0 %1255, %v1246
      %v1257 = vpop.permute.xlu0 %1256
      %1260 = vset.pattern.permute.xlu0 0
      %1261 = vperm.xlu0 %1260, %v1247
      %v1262 = vpop.permute.xlu0 %1261
      %1265 = vset.pattern.permute.xlu0 0
      %1266 = vperm.xlu0 %1265, %v1248
      %v1267 = vpop.permute.xlu0 %1266
      %1270 = vset.pattern.permute.xlu0 0
      %1271 = vperm.xlu0 %1270, %v1249
      %v1272 = vpop.permute.xlu0 %1271
      %1275 = vset.pattern.permute.xlu0 0
      %1276 = vperm.xlu0 %1275, %v1250
      %v1277 = vpop.permute.xlu0 %1276
      %1280 = vset.pattern.permute.xlu0 0
      %1281 = vperm.xlu0 %1280, %v1251
      %v1282 = vpop.permute.xlu0 %1281
      %1285 = vset.pattern.permute.xlu0 0
      %1286 = vperm.xlu0 %1285, %v1252
      %v1287 = vpop.permute.xlu0 %1286
      %1290 = vset.pattern.permute.xlu0 0
      %1291 = vperm.xlu0 %1290, %v1253
      %v1292 = vpop.permute.xlu0 %1291
      %v1294 = vmul.f32 %v225, %v1257
      %v1295 = vmul.f32 %v226, %v1257
      %v1296 = vmul.f32 %v227, %v1262
      %v1297 = vmul.f32 %v228, %v1262
      %v1298 = vmul.f32 %v229, %v1267
      %v1299 = vmul.f32 %v230, %v1267
      %v1300 = vmul.f32 %v231, %v1272
      %v1301 = vmul.f32 %v232, %v1272
      %v1302 = vmul.f32 %v233, %v1277
      %v1303 = vmul.f32 %v234, %v1277
      %v1304 = vmul.f32 %v235, %v1282
      %v1305 = vmul.f32 %v236, %v1282
      %v1306 = vmul.f32 %v237, %v1287
      %v1307 = vmul.f32 %v238, %v1287
      %v1308 = vmul.f32 %v239, %v1292
      %v1309 = vmul.f32 %v240, %v1292
      %1310 = vst [vmem:[%s224] sm:$0xff] %v1294
      %1311 = vst [vmem:[%s224 + $0x8] sm:$0xff] %v1295
      %1312 = vst [vmem:[%s224 + $0x10] sm:$0xff] %v1296
      %1313 = vst [vmem:[%s224 + $0x18] sm:$0xff] %v1297
      %1314 = vst [vmem:[%s224 + $0x20] sm:$0xff] %v1298
      %1315 = vst [vmem:[%s224 + $0x28] sm:$0xff] %v1299
      %1316 = vst [vmem:[%s224 + $0x30] sm:$0xff] %v1300
      %1317 = vst [vmem:[%s224 + $0x38] sm:$0xff] %v1301
      %1318 = vst [vmem:[%s224 + $0x40] sm:$0xff] %v1302
      %1319 = vst [vmem:[%s224 + $0x48] sm:$0xff] %v1303
      %1320 = vst [vmem:[%s224 + $0x50] sm:$0xff] %v1304
      %1321 = vst [vmem:[%s224 + $0x58] sm:$0xff] %v1305
      %1322 = vst [vmem:[%s224 + $0x60] sm:$0xff] %v1306
      %1323 = vst [vmem:[%s224 + $0x68] sm:$0xff] %v1307
      %1324 = vst [vmem:[%s224 + $0x70] sm:$0xff] %v1308
      %1325 = vst [vmem:[%s224 + $0x78] sm:$0xff] %v1309
      %p1326 = scmp.lt.s32.totalorder %s16, 1
      %s1327 = scalar_select %p1326, %s16, 1
      %s1328 = smul.addr %s1327, 16
      %s1329 = smul.addr %s1328, 8
      %s1330 = scalar_lea.vmem %s5, %s1329
      // Predicated region
      $region41: #{se_layer.1} parent=39 // pred_check
        %p1331 = pneg %p144
      $region42: #{se_layer.1} parent=39 // pred_check_branch
        %1333 = sbr.rel (%p1331) target = $region44
      $region43: #{se_layer.1} parent=39 // pred_region
        _
      $region44: #{se_layer.1} parent=39 // pred_fallthru
        _
    $region40: #{se_layer.1} parent=5 // pred_fallthru
      _
    %p1334 = scmp.le.s32.totalorder 2, %s11
    // Predicated region
    $region45: #{se_layer.1} parent=5 // pred_check
      %p1335 = pneg %p1334
    $region46: #{se_layer.1} parent=5 // pred_check_branch
      %1337 = sbr.rel (%p1335) target = $region48
    $region47: #{se_layer.1} parent=5 // pred_region
      %s1338 = ssub.s32 %s11, 2
      // Predicated region
      $region49: #{se_layer.1} parent=47 // pred_check
        %p1339 = pneg %p150
      $region50: #{se_layer.1} parent=47 // pred_check_branch
        %1341 = sbr.rel (%p1339) target = $region52
      $region51: #{se_layer.1} parent=47 // pred_region
        %p1342 = scmp.lt.s32.totalorder %s17, 1
        %s1343 = scalar_select %p1342, %s17, 1
        %s1344 = smul.addr %s1343, 16
        %s1345 = smul.addr %s1344, 8
        %s1346 = scalar_lea.vmem %s5, %s1345
      $region52: #{se_layer.1} parent=47 // pred_fallthru
        _
    $region48: #{se_layer.1} parent=5 // pred_fallthru
      _
  $region6: #{se_layer.1} parent=0 // loop_footer
    %s15 = sadd.s32 1, %s11
  $region7: #{se_layer.1} parent=0 // loop_footer_branch
    %10 = sbr.rel target = $region3
  $region8: #{se_layer.1} parent=0 // loop_exit
    _

</llo_original>
